<compile_context>
chip_gen: v6e
topology: v6e:2x2x1
jax: 0.10.0
libtpu: 0.0.40
codegen_flags: <defaults>
</compile_context>

<pallas_src>
import functools

import jax
import jax.numpy as jnp
from jax.experimental import pallas as pl
from jax.experimental.pallas import tpu as pltpu

DILATIONS = (6, 12, 18)                 # cfg.MODEL.OUTPUT_STRIDE == 16
_VMEM_LIMIT = 48 * 1024 * 1024          # <= 48 MiB: safe on v5e / v6e / v7x


# --------------------------------------------------------------------------
# tile-size helpers
# --------------------------------------------------------------------------
def _pick_tm(hw, cap=512):
    """Largest divisor of hw that is a multiple of 8 and <= cap (else hw)."""
    for t in range(min(cap, hw), 0, -1):
        if hw % t == 0 and (t % 8 == 0 or t == hw):
            return t
    return hw


def _pick_ct(c):
    """Channel tile: 256 or 128 if they divide C, else full C."""
    for t in (256, 128):
        if c % t == 0:
            return t
    return c


# --------------------------------------------------------------------------
# Pallas kernels
# --------------------------------------------------------------------------
def _pw_multi_kernel(*refs, n_in, relu, has_extra):
    """Fused 1x1 conv: out = [relu]((sum_i X_i @ W_i + extra) * scale + bias).

    refs layout: x_0..x_{n-1}, w_0..w_{n-1}, [extra], scale, bias, out.
    X_i block: (1, TM, Cin_i) f32; W_i: (Cin_i, Coutp) bf16;
    extra: (1, 1, Coutp) f32; scale/bias: (1, Coutp) f32; out: (1, TM, Coutp).
    """
    xs = refs[:n_in]
    ws = refs[n_in:2 * n_in]
    i = 2 * n_in
    extra_ref = None
    if has_extra:
        extra_ref = refs[i]
        i += 1
    s_ref, b_ref, o_ref = refs[i], refs[i + 1], refs[i + 2]
    tm, coutp = o_ref.shape[1], o_ref.shape[2]

    acc = jnp.zeros((tm, coutp), jnp.float32)
    for x_ref, w_ref in zip(xs, ws):
        acc = acc + jnp.dot(x_ref[0].astype(jnp.bfloat16), w_ref[...],
                            preferred_element_type=jnp.float32)
    if extra_ref is not None:
        acc = acc + extra_ref[0]                       # (1, Coutp) broadcast
    y = acc * s_ref[...] + b_ref[...]                  # f32 epilogue (v5e ok)
    if relu:
        y = jnp.maximum(y, 0.0)
    o_ref[0] = y.astype(o_ref.dtype)


def _dw_multi_kernel(*refs, dils, H, W):
    """Depthwise 3x3 (several dilations) + folded BN + ReLU.

    refs: x (1,H,W,CT), w (ndil,3,3,CT), s (ndil,CT), b (ndil,CT),
          out_0..out_{ndil-1} (1,H,W,CT), pad scratch (1,H+2*maxd,W+2*maxd,CT).
    The input tile is zero-padded into VMEM scratch (no HBM padding).
    """
    ndil = len(dils)
    x_ref, w_ref, s_ref, b_ref = refs[:4]
    out_refs = refs[4:4 + ndil]
    pad_ref = refs[4 + ndil]
    maxd = max(dils)

    pad_ref[...] = jnp.zeros(pad_ref.shape, jnp.float32)
    pad_ref[:, maxd:maxd + H, maxd:maxd + W, :] = x_ref[...]

    w = w_ref[...]                                     # (ndil, 3, 3, CT)
    s = s_ref[...]                                     # (ndil, CT)
    b = b_ref[...]
    for di, d in enumerate(dils):
        wd = w[di]                                     # (3, 3, CT)
        off = maxd - d
        acc = jnp.zeros(out_refs[di].shape, jnp.float32)
        for ky in range(3):
            for kx in range(3):
                acc = acc + (pad_ref[:, off + ky * d: off + ky * d + H,
                                        off + kx * d: off + kx * d + W, :]
                             * wd[ky, kx, :])
        y = acc * s[di:di + 1, :] + b[di:di + 1, :]
        out_refs[di][...] = jnp.maximum(y, 0.0)


def _gap_conv_kernel(x_ref, w_ref, s_ref, b_ref, o_ref):
    """AdaptiveAvgPool2d((1,1)) fused with 1x1 conv + BN + ReLU (per image)."""
    xm = jnp.mean(x_ref[...], axis=(1, 2), keepdims=True)     # (1,1,1,C)
    xm = xm.reshape(1, x_ref.shape[-1])                        # (1, C)
    y = jnp.dot(xm.astype(jnp.bfloat16), w_ref[...],
                preferred_element_type=jnp.float32)            # (1, Cout)
    y = y * s_ref[...] + b_ref[...]
    o_ref[0] = jnp.maximum(y, 0.0).astype(o_ref.dtype)


# --------------------------------------------------------------------------
# Pallas wrappers
# --------------------------------------------------------------------------
def pointwise_conv(inputs, weights, scale, bias, *, relu=True, extra=None):
    """Fused (split-K) 1x1 conv with folded BN scale/bias and optional ReLU.

    inputs : list of (N,H,W,Cin_i) f32 tensors (same N,H,W).
    weights: list of (Cin_i, Coutp) bf16 matrices (Coutp multiple of 128).
    extra  : optional (N, Coutp) per-image additive term (added pre-BN).
    Returns (N, H, W, Coutp) f32.
    """
    N, H, W, _ = inputs[0].shape
    HW = H * W
    coutp = weights[0].shape[1]
    TM = _pick_tm(HW)

    args, in_specs = [], []
    for x in inputs:
        cin = x.shape[-1]
        args.append(x.reshape(N, HW, cin))
        in_specs.append(pl.BlockSpec((1, TM, cin), lambda n, m: (n, m, 0)))
    for w in weights:
        args.append(w)
        in_specs.append(pl.BlockSpec(w.shape, lambda n, m: (0, 0)))
    has_extra = extra is not None
    if has_extra:
        args.append(extra.reshape(N, 1, coutp).astype(jnp.float32))
        in_specs.append(pl.BlockSpec((1, 1, coutp), lambda n, m: (n, 0, 0)))
    args.append(scale.reshape(1, coutp).astype(jnp.float32))
    in_specs.append(pl.BlockSpec((1, coutp), lambda n, m: (0, 0)))
    args.append(bias.reshape(1, coutp).astype(jnp.float32))
    in_specs.append(pl.BlockSpec((1, coutp), lambda n, m: (0, 0)))

    out = pl.pallas_call(
        functools.partial(_pw_multi_kernel, n_in=len(inputs), relu=relu,
                          has_extra=has_extra),
        out_shape=jax.ShapeDtypeStruct((N, HW, coutp), jnp.float32),
        grid_spec=pltpu.PrefetchScalarGridSpec(
            num_scalar_prefetch=0,
            grid=(N, HW // TM),
            in_specs=in_specs,
            out_specs=pl.BlockSpec((1, TM, coutp), lambda n, m: (n, m, 0)),
        ),
        compiler_params=pltpu.CompilerParams(
            dimension_semantics=("parallel", "parallel"),
            vmem_limit_bytes=_VMEM_LIMIT),
    )(*args)
    return out.reshape(N, H, W, coutp)


def depthwise_multi(x, w, scale, bias, dils):
    """Depthwise 3x3 convs (padding=dilation) + folded BN + ReLU.

    x: (N,H,W,C) f32; w: (ndil,3,3,C) f32; scale,bias: (ndil,C) f32.
    Returns a tuple of ndil tensors (N,H,W,C).  x is loaded into VMEM once per
    (image, channel-tile) grid step and shared by all dilations.
    """
    N, H, W, C = x.shape
    ndil = len(dils)
    maxd = max(dils)
    CT = _pick_ct(C)
    Hp, Wp = H + 2 * maxd, W + 2 * maxd

    outs = pl.pallas_call(
        functools.partial(_dw_multi_kernel, dils=tuple(dils), H=H, W=W),
        out_shape=tuple(jax.ShapeDtypeStruct((N, H, W, C), jnp.float32)
                        for _ in range(ndil)),
        grid_spec=pltpu.PrefetchScalarGridSpec(
            num_scalar_prefetch=0,
            grid=(N, C // CT),
            in_specs=[
                pl.BlockSpec((1, H, W, CT), lambda n, c: (n, 0, 0, c)),
                pl.BlockSpec((ndil, 3, 3, CT), lambda n, c: (0, 0, 0, c)),
                pl.BlockSpec((ndil, CT), lambda n, c: (0, c)),
                pl.BlockSpec((ndil, CT), lambda n, c: (0, c)),
            ],
            out_specs=tuple(pl.BlockSpec((1, H, W, CT), lambda n, c: (n, 0, 0, c))
                            for _ in range(ndil)),
            scratch_shapes=[pltpu.VMEM((1, Hp, Wp, CT), jnp.float32)],
        ),
        compiler_params=pltpu.CompilerParams(
            dimension_semantics=("parallel", "parallel"),
            vmem_limit_bytes=_VMEM_LIMIT),
    )(x, w, scale, bias)
    if not isinstance(outs, (tuple, list)):
        outs = (outs,)
    return tuple(outs)


def gap_image_pooling(x, w, scale, bias):
    """image_pooling branch: GAP + 1x1 conv + BN + ReLU fused. Returns (N,1,Cout)."""
    N, H, W, C = x.shape
    cout = w.shape[1]
    return pl.pallas_call(
        _gap_conv_kernel,
        out_shape=jax.ShapeDtypeStruct((N, 1, cout), jnp.float32),
        grid_spec=pltpu.PrefetchScalarGridSpec(
            num_scalar_prefetch=0,
            grid=(N,),
            in_specs=[
                pl.BlockSpec((1, H, W, C), lambda n: (n, 0, 0, 0)),
                pl.BlockSpec((C, cout), lambda n: (0, 0)),
                pl.BlockSpec((1, cout), lambda n: (0, 0)),
                pl.BlockSpec((1, cout), lambda n: (0, 0)),
            ],
            out_specs=pl.BlockSpec((1, 1, cout), lambda n: (n, 0, 0)),
        ),
        compiler_params=pltpu.CompilerParams(
            dimension_semantics=("parallel",),
            vmem_limit_bytes=_VMEM_LIMIT),
    )(x, w, scale.reshape(1, cout), bias.reshape(1, cout))


def nearest_resize(x, out_h, out_w):
    """F.interpolate(mode='nearest'). Integer-factor case uses broadcast/reshape."""
    N, H, W, C = x.shape
    if out_h % H == 0 and out_w % W == 0:
        fh, fw = out_h // H, out_w // W
        y = jnp.broadcast_to(x[:, :, None, :, None, :], (N, H, fh, W, fw, C))
        return y.reshape(N, out_h, out_w, C)
    hi = (jnp.arange(out_h) * H) // out_h
    wi = (jnp.arange(out_w) * W) // out_w
    return x[:, hi][:, :, wi]
    # TODO(synk): fusing the upsample into the consumer's index_map would avoid
    # materializing the upsampled tensor entirely.


# --------------------------------------------------------------------------
# Parameter initialization (logical, PyTorch-equivalent) + kernel packing
# --------------------------------------------------------------------------
def _bn_fold(key, c, eps=1e-5):
    k1, k2, k3, k4 = jax.random.split(key, 4)
    gamma = 1.0 + 0.1 * jax.random.normal(k1, (c,), jnp.float32)
    beta = 0.1 * jax.random.normal(k2, (c,), jnp.float32)
    mean = 0.1 * jax.random.normal(k3, (c,), jnp.float32)
    var = 1.0 + 0.1 * jnp.abs(jax.random.normal(k4, (c,), jnp.float32))
    scale = gamma / jnp.sqrt(var + eps)
    bias = beta - mean * scale
    return scale, bias


def _conv_w(key, cin, cout, std=0.05):
    # PyTorch weight (Cout,Cin,1,1) stored as (Cin,Cout) for the matmul.
    return std * jax.random.normal(key, (cin, cout), jnp.float32)


def _dw_w(key, c, std=0.1):
    # PyTorch depthwise weight (C,1,3,3) stored as (3,3,C).
    return std * jax.random.normal(key, (3, 3, c), jnp.float32)


def init_params(key, c4_channels, c1_channels, nclass):
    keys = iter(jax.random.split(key, 64))
    nk = lambda: next(keys)
    p = {}
    # _ASPP(c4_channels, 256)
    p["ip_w"] = _conv_w(nk(), c4_channels, 256)                # image_pooling conv
    p["ip_s"], p["ip_b"] = _bn_fold(nk(), 256)
    p["a0_w"] = _conv_w(nk(), c4_channels, 256)                # aspp0
    p["a0_s"], p["a0_b"] = _bn_fold(nk(), 256)
    for i in (1, 2, 3):                                        # aspp1..3 (separable)
        sp = {}
        sp["dw_w"] = _dw_w(nk(), c4_channels)
        sp["dw_s"], sp["dw_b"] = _bn_fold(nk(), c4_channels)
        sp["pw_w"] = _conv_w(nk(), c4_channels, 256)
        sp["pw_s"], sp["pw_b"] = _bn_fold(nk(), 256)
        p[f"aspp{i}"] = sp
    p["proj_w"] = _conv_w(nk(), 256 * 5, 256)                  # ASPP projection conv
    p["proj_s"], p["proj_b"] = _bn_fold(nk(), 256)
    # c1_block: _ConvBNReLU(c1_channels, 48, 1)
    p["c1_w"] = _conv_w(nk(), c1_channels, 48)
    p["c1_s"], p["c1_b"] = _bn_fold(nk(), 48)
    # decoder: SepConv(304->256) -> SepConv(256->256) -> Conv(256->nclass)
    for name, cin, cout in (("sep_a", 256 + 48, 256), ("sep_b", 256, 256)):
        sp = {}
        sp["dw_w"] = _dw_w(nk(), cin)
        sp["dw_s"], sp["dw_b"] = _bn_fold(nk(), cin)
        sp["pw_w"] = _conv_w(nk(), cin, cout)
        sp["pw_s"], sp["pw_b"] = _bn_fold(nk(), cout)
        p[name] = sp
    p["final_w"] = _conv_w(nk(), 256, nclass)
    p["final_b"] = 0.1 * jax.random.normal(nk(), (nclass,), jnp.float32)
    return p


def pack_params(lp):
    """Kernel layout: bf16 matmul weights, split/stacked branches, lane padding."""
    bf = lambda w: w.astype(jnp.bfloat16)
    p = {}
    p["ip_w"], p["ip_s"], p["ip_b"] = bf(lp["ip_w"]), lp["ip_s"], lp["ip_b"]
    p["a0_w"], p["a0_s"], p["a0_b"] = bf(lp["a0_w"]), lp["a0_s"], lp["a0_b"]
    # fused ASPP depthwise: stack the three dilations along a leading axis
    p["aspp_dw_w"] = jnp.stack([lp[f"aspp{i}"]["dw_w"] for i in (1, 2, 3)])
    p["aspp_dw_s"] = jnp.stack([lp[f"aspp{i}"]["dw_s"] for i in (1, 2, 3)])
    p["aspp_dw_b"] = jnp.stack([lp[f"aspp{i}"]["dw_b"] for i in (1, 2, 3)])
    for i in (1, 2, 3):
        p[f"aspp{i}_pw_w"] = bf(lp[f"aspp{i}"]["pw_w"])
        p[f"aspp{i}_pw_s"] = lp[f"aspp{i}"]["pw_s"]
        p[f"aspp{i}_pw_b"] = lp[f"aspp{i}"]["pw_b"]
    # split the 1280->256 projection by concat source: (pool, x0, x1, x2, x3)
    W = lp["proj_w"]
    p["proj_w_pool"] = bf(W[0:256])
    for i in range(4):
        p[f"proj_w{i}"] = bf(W[256 * (i + 1):256 * (i + 2)])
    p["proj_s"], p["proj_b"] = lp["proj_s"], lp["proj_b"]
    # c1 block: Cout 48 -> lane-padded to 128 (padded channels stay exactly 0)
    p["c1_w"] = bf(jnp.pad(lp["c1_w"], ((0, 0), (0, 128 - 48))))
    p["c1_s"] = jnp.pad(lp["c1_s"], (0, 128 - 48), constant_values=1.0)
    p["c1_b"] = jnp.pad(lp["c1_b"], (0, 128 - 48))
    # decoder sep_a: split the 304-ch concat into 256 (ASPP) + 48->128 (c1)
    dw = lp["sep_a"]["dw_w"]                                    # (3,3,304)
    p["sepa_dw_a_w"] = dw[:, :, :256][None]
    p["sepa_dw_c_w"] = jnp.pad(dw[:, :, 256:], ((0, 0), (0, 0), (0, 128 - 48)))[None]
    p["sepa_dw_a_s"] = lp["sep_a"]["dw_s"][:256][None]
    p["sepa_dw_a_b"] = lp["sep_a"]["dw_b"][:256][None]
    p["sepa_dw_c_s"] = jnp.pad(lp["sep_a"]["dw_s"][256:], (0, 128 - 48),
                               constant_values=1.0)[None]
    p["sepa_dw_c_b"] = jnp.pad(lp["sep_a"]["dw_b"][256:], (0, 128 - 48))[None]
    pw = lp["sep_a"]["pw_w"]                                    # (304,256)
    p["sepa_pw_a_w"] = bf(pw[:256])
    p["sepa_pw_c_w"] = bf(jnp.pad(pw[256:], ((0, 128 - 48), (0, 0))))
    p["sepa_pw_s"], p["sepa_pw_b"] = lp["sep_a"]["pw_s"], lp["sep_a"]["pw_b"]
    # sep_b
    p["sepb_dw_w"] = lp["sep_b"]["dw_w"][None]
    p["sepb_dw_s"] = lp["sep_b"]["dw_s"][None]
    p["sepb_dw_b"] = lp["sep_b"]["dw_b"][None]
    p["sepb_pw_w"] = bf(lp["sep_b"]["pw_w"])
    p["sepb_pw_s"], p["sepb_pw_b"] = lp["sep_b"]["pw_s"], lp["sep_b"]["pw_b"]
    # final conv (has bias, no BN/ReLU): Cout nclass -> lane-padded to 128
    nclass = lp["final_w"].shape[1]
    coutp = 128 * max(1, -(-nclass // 128))
    p["final_w"] = bf(jnp.pad(lp["final_w"], ((0, 0), (0, coutp - nclass))))
    p["final_s"] = jnp.ones((coutp,), jnp.float32)
    p["final_b"] = jnp.pad(lp["final_b"], (0, coutp - nclass))
    p["nclass"] = nclass
    return p


# --------------------------------------------------------------------------
# _DeepLabHead.forward(x, c1)
# --------------------------------------------------------------------------
def deeplab_head_forward(p, x_nchw, c1_nchw):
    x = jnp.transpose(x_nchw, (0, 2, 3, 1)).astype(jnp.float32)     # NCHW -> NHWC
    c1 = jnp.transpose(c1_nchw, (0, 2, 3, 1)).astype(jnp.float32)
    N, H4, W4, _ = x.shape
    _, H1, W1, _ = c1.shape

    # ---------------- _ASPP ----------------
    # image pooling branch (GAP + conv + BN + ReLU fused); its nearest-upsample
    # is spatially constant, so fold it into a per-image row of the projection.
    pool_vec = gap_image_pooling(x, p["ip_w"], p["ip_s"], p["ip_b"])    # (N,1,256)
    pool_contrib = jnp.dot(pool_vec[:, 0, :].astype(jnp.bfloat16),
                           p["proj_w_pool"],
                           preferred_element_type=jnp.float32)          # (N,256)

    x0 = pointwise_conv([x], [p["a0_w"]], p["a0_s"], p["a0_b"], relu=True)

    # aspp1..3 depthwise stages share one load of x (single fused kernel)
    dw1, dw2, dw3 = depthwise_multi(x, p["aspp_dw_w"], p["aspp_dw_s"],
                                    p["aspp_dw_b"], DILATIONS)
    x1 = pointwise_conv([dw1], [p["aspp1_pw_w"]], p["aspp1_pw_s"], p["aspp1_pw_b"])
    x2 = pointwise_conv([dw2], [p["aspp2_pw_w"]], p["aspp2_pw_s"], p["aspp2_pw_b"])
    x3 = pointwise_conv([dw3], [p["aspp3_pw_w"]], p["aspp3_pw_s"], p["aspp3_pw_b"])

    # 1280->256 projection as split-K accumulation (no HBM concat)
    a = pointwise_conv([x0, x1, x2, x3],
                       [p["proj_w0"], p["proj_w1"], p["proj_w2"], p["proj_w3"]],
                       p["proj_s"], p["proj_b"], relu=True, extra=pool_contrib)
    # TODO(synk): Dropout2d(p=0.1) is identity at inference; training RNG not modeled.

    # ---------------- decoder ----------------
    a = nearest_resize(a, H1, W1)                                       # nearest 4x
    c1f = pointwise_conv([c1], [p["c1_w"]], p["c1_s"], p["c1_b"])       # (N,H1,W1,128), 48 real

    # sep_a on the (conceptual) 304-ch concat without materializing it:
    # depthwise is channel-independent, pointwise is a 2-way split-K sum.
    (a_dw,) = depthwise_multi(a, p["sepa_dw_a_w"], p["sepa_dw_a_s"],
                              p["sepa_dw_a_b"], (1,))
    (c_dw,) = depthwise_multi(c1f, p["sepa_dw_c_w"], p["sepa_dw_c_s"],
                              p["sepa_dw_c_b"], (1,))
    y = pointwise_conv([a_dw, c_dw], [p["sepa_pw_a_w"], p["sepa_pw_c_w"]],
                       p["sepa_pw_s"], p["sepa_pw_b"], relu=True)

    # sep_b
    (y_dw,) = depthwise_multi(y, p["sepb_dw_w"], p["sepb_dw_s"],
                              p["sepb_dw_b"], (1,))
    y = pointwise_conv([y_dw], [p["sepb_pw_w"]], p["sepb_pw_s"], p["sepb_pw_b"],
                       relu=True)

    # final 1x1 conv (with bias); output lane-padded to 128, slice real classes
    y = pointwise_conv([y], [p["final_w"]], p["final_s"], p["final_b"], relu=False)
    y = y[..., :p["nclass"]]
    return jnp.transpose(y, (0, 3, 1, 2))                               # NHWC -> NCHW


# --------------------------------------------------------------------------
if __name__ == "__main__":
    # Small synthetic shapes consistent with the module:
    #   x  : high-level features (stride-16 map)  -> (N, C4, 8, 8)
    #   c1 : low-level features  (stride-4 map)   -> (N, C1, 32, 32)
    N, C4, H4, W4 = 2, 64, 8, 8
    C1, H1, W1 = 32, 32, 32
    NCLASS = 8

    key = jax.random.PRNGKey(0)
    kx, kc, kp = jax.random.split(key, 3)
    x = jax.random.normal(kx, (N, C4, H4, W4), jnp.float32)   # NCHW like PyTorch
    c1 = jax.random.normal(kc, (N, C1, H1, W1), jnp.float32)
    logical_params = init_params(kp, C4, C1, NCLASS)
    params = pack_params(logical_params)

    out = deeplab_head_forward(params, x, c1)
    out = jax.block_until_ready(out)

    assert out.shape == (N, NCLASS, H1, W1), out.shape
    assert bool(jnp.all(jnp.isfinite(out)))
    print("KERNEL_OK")
</pallas_src>

<mosaic_0001>
module attributes {stable_mosaic.version = 11 : i64} {
  func.func @_gap_conv_kernel(%arg0: i32, %arg1: memref<1x8x8x64xf32, #tpu.memory_space<vmem>>, %arg2: memref<64x256xbf16, #tpu.memory_space<vmem>>, %arg3: memref<1x256xf32, #tpu.memory_space<vmem>>, %arg4: memref<1x256xf32, #tpu.memory_space<vmem>>, %arg5: memref<1x1x256xf32, #tpu.memory_space<vmem>>) attributes {dimension_semantics = [#tpu.dimension_semantics<parallel>], iteration_bounds = array<i64: 2>, scalar_prefetch = 0 : i64, scratch_operands = 0 : i64, tpu.core_type = #tpu.core_type<tc>, window_params = [{transform_indices = @transform_0, window_bounds = array<i64: 1, 8, 8, 64>}, {pipeline_mode = #tpu.pipeline_mode<synchronous>, transform_indices = @transform_1, window_bounds = array<i64: 64, 256>}, {pipeline_mode = #tpu.pipeline_mode<synchronous>, transform_indices = @transform_2, window_bounds = array<i64: 1, 256>}, {pipeline_mode = #tpu.pipeline_mode<synchronous>, transform_indices = @transform_3, window_bounds = array<i64: 1, 256>}, {transform_indices = @transform_4, window_bounds = array<i64: 1, 1, 256>}]} {
    %c0 = arith.constant 0 : index
    %c0_0 = arith.constant 0 : index
    %c0_1 = arith.constant 0 : index
    %c0_2 = arith.constant 0 : index
    %0 = vector.load %arg1[%c0, %c0_0, %c0_1, %c0_2] : memref<1x8x8x64xf32, #tpu.memory_space<vmem>>, vector<1x8x8x64xf32>
    %cst = arith.constant dense<0.000000e+00> : vector<1x64xf32>
    %1 = vector.multi_reduction <add>, %0, %cst [1, 2] : vector<1x8x8x64xf32> to vector<1x64xf32>
    %2 = vector.shape_cast %1 : vector<1x64xf32> to vector<1x1x1x64xf32>
    %cst_3 = arith.constant 6.400000e+01 : f32
    %3 = vector.broadcast %cst_3 : f32 to vector<1x1x1x64xf32>
    %4 = arith.divf %2, %3 : vector<1x1x1x64xf32>
    %5 = vector.shape_cast %4 : vector<1x1x1x64xf32> to vector<1x64xf32>
    %6 = arith.truncf %5 : vector<1x64xf32> to vector<1x64xbf16>
    %c0_4 = arith.constant 0 : index
    %c0_5 = arith.constant 0 : index
    %7 = vector.load %arg2[%c0_4, %c0_5] : memref<64x256xbf16, #tpu.memory_space<vmem>>, vector<64x256xbf16>
    %cst_6 = arith.constant dense<0.000000e+00> : vector<1x256xf32>
    %8 = tpu.matmul %6, %7, %cst_6 {dimension_numbers = #tpu.dot_dimension_numbers<[1], [0], [0], [1], [0, 0, 1, 1], [], []>} : vector<1x64xbf16>, vector<64x256xbf16>, vector<1x256xf32> -> vector<1x256xf32>
    %c0_7 = arith.constant 0 : index
    %c0_8 = arith.constant 0 : index
    %9 = vector.load %arg3[%c0_7, %c0_8] : memref<1x256xf32, #tpu.memory_space<vmem>>, vector<1x256xf32>
    %10 = arith.mulf %8, %9 : vector<1x256xf32>
    %c0_9 = arith.constant 0 : index
    %c0_10 = arith.constant 0 : index
    %11 = vector.load %arg4[%c0_9, %c0_10] : memref<1x256xf32, #tpu.memory_space<vmem>>, vector<1x256xf32>
    %12 = arith.addf %10, %11 : vector<1x256xf32>
    %cst_11 = arith.constant 0.000000e+00 : f32
    %13 = vector.broadcast %cst_11 : f32 to vector<1x256xf32>
    %14 = arith.maximumf %12, %13 : vector<1x256xf32>
    %c0_12 = arith.constant 0 : index
    %c0_13 = arith.constant 0 : index
    %c0_14 = arith.constant 0 : index
    %15 = vector.load %arg5[%c0_12, %c0_13, %c0_14] : memref<1x1x256xf32, #tpu.memory_space<vmem>>, vector<1x1x256xf32>
    %16 = vector.shape_cast %15 : vector<1x1x256xf32> to vector<1x256xf32>
    %17 = vector.shape_cast %14 : vector<1x256xf32> to vector<1x1x256xf32>
    tpu.vector_store %arg5[%c0_12, %c0_13, %c0_14], %17 {strides = array<i32>} : memref<1x1x256xf32, #tpu.memory_space<vmem>>, vector<1x1x256xf32>,
    return
  }
  func.func @transform_0(%arg0: i32) -> (i32, i32, i32, i32) {
    %c0_i32 = arith.constant 0 : i32
    %c0_i32_0 = arith.constant 0 : i32
    %c0_i32_1 = arith.constant 0 : i32
    %c0_i32_2 = arith.constant 0 : i32
    return %arg0, %c0_i32, %c0_i32_0, %c0_i32_1 : i32, i32, i32, i32
  }
  func.func @transform_1(%arg0: i32) -> (i32, i32) {
    %c0_i32 = arith.constant 0 : i32
    %c0_i32_0 = arith.constant 0 : i32
    %c0_i32_1 = arith.constant 0 : i32
    return %c0_i32, %c0_i32_0 : i32, i32
  }
  func.func @transform_2(%arg0: i32) -> (i32, i32) {
    %c0_i32 = arith.constant 0 : i32
    %c0_i32_0 = arith.constant 0 : i32
    %c0_i32_1 = arith.constant 0 : i32
    return %c0_i32, %c0_i32_0 : i32, i32
  }
  func.func @transform_3(%arg0: i32) -> (i32, i32) {
    %c0_i32 = arith.constant 0 : i32
    %c0_i32_0 = arith.constant 0 : i32
    %c0_i32_1 = arith.constant 0 : i32
    return %c0_i32, %c0_i32_0 : i32, i32
  }
  func.func @transform_4(%arg0: i32) -> (i32, i32, i32) {
    %c0_i32 = arith.constant 0 : i32
    %c0_i32_0 = arith.constant 0 : i32
    %c0_i32_1 = arith.constant 0 : i32
    return %arg0, %c0_i32, %c0_i32_0 : i32, i32, i32
  }
}

</mosaic_0001>

<llo_original>
// kernel: tpu_custom_call.1
$region0: #{tpu_custom_call.1}
  #allocation0 [shape = 'u32[]', space=smem, size = 0x4, offset = 0x4, fixed_abs, tag = 'smem constant byte address 0x4 - core index']
  #allocation1 [shape = 'u32[144,128]{1,0:T(1,128)}', space=vmem, size = 0x12000, scoped, tag = 'internal scratch']
  %s0 = inlined_call_operand.hbm [shape: f32[2,8,8,64], index: 0, kind: input, shape index: {}]
  %s1 = inlined_call_operand.hbm [shape: bf16[64,256], index: 1, kind: input, shape index: {}]
  %s2 = inlined_call_operand.vmem [shape: f32[1,256], index: 2, kind: input, shape index: {}]
  %s3 = inlined_call_operand.vmem [shape: f32[1,256], index: 3, kind: input, shape index: {}]
  %s4 = inlined_call_operand.hbm [shape: f32[2,1,256], index: 4, kind: output, shape index: {}]
  %s5 = sld [smem:[#allocation0]]
  $region57: #{tpu_custom_call.1} parent=0
    _
  %s7 = ssub.s32 1, %s5
  %s8 = scalar_select 0, %s7, %s5
  $region1: #{tpu_custom_call.1} parent=0
    #allocation2 [shape = 'u8[65536]{0}', space=vmem, size = 0x10000, scoped, tag = 'input window, operand 0']
    #allocation3 [shape = 's32[2]{0}', space=sflag, size = 0x8, scoped, tag = 'scoped memory for tpu_custom_call.1']
    #allocation4 [shape = 's32[2]{0}', space=sflag, size = 0x8, scoped, tag = 'scoped memory for tpu_custom_call.1']
    #allocation5 [shape = 'u8[32768]{0}', space=vmem, size = 0x8000, scoped, tag = 'input window, operand 1, single buffered']
    #allocation6 [shape = 's32[1]{0}', space=sflag, size = 0x4, scoped, tag = 'scoped memory for tpu_custom_call.1']
    #allocation7 [shape = 'u8[2048]{0}', space=vmem, size = 0x800, scoped, tag = 'output window, operand 0']
    %9 = vsyncpa [#allocation3], 0
    %s10 = scalar_lea.sflag [#allocation3], 1
    %11 = vsyncpa %s10, 0
    %12 = vsyncpa [#allocation6], 0
    %13 = vsyncpa [#allocation4], 0
    %s14 = scalar_lea.sflag [#allocation4], 1
    %15 = vsyncpa %s14, 0
    loop: start=0, step=1, limit=4
    $region2: #{tpu_custom_call.1} parent=1 // loop_pre_header
      _
    $region3: #{tpu_custom_call.1} parent=1 // loop_header
      %s17 = sphi 0, %s21
      %p18 = scmp.ge.s32.totalorder %s17, 4
      %s27 = sphi 0, %s29
      %s30 = sphi 0, %s27
      %s31 = sphi 0, %s30
      %s47 = sphi 0, %s31
      %s51 = sphi 0, %s51
      %s53 = sphi 0, %s51
      %s54 = sphi 0, %s53
      %s68 = sphi 0, %s54
      %s72 = sphi 0, %s72
      %s74 = sphi 0, %s72
      %s75 = sphi 0, %s74
      %s89 = sphi 0, %s75
      %s93 = sphi 0, %s93
      %s95 = sphi 0, %s93
      %s96 = sphi 0, %s95
      %s110 = sphi 0, %s96
      %s116 = sphi 0, %s118
      %s119 = sphi 0, %s116
      %s120 = sphi 0, %s119
      %s136 = sphi 0, %s120
    $region4: #{tpu_custom_call.1} parent=1 // loop_header_branch
      %20 = sbr.rel (%p18) target = $region8
    $region5: #{tpu_custom_call.1} parent=1 // loop_body
      %s22 = ssub.s32 %s17, 1
      %s23 = ssub.s32 %s17, 2
      %s24 = sadd.s32 %s17, 1
      %s25 = ssub.s32 %s17, %s24
      %p26 = scmp.eq.s32.totalorder %s25, 0
      %s28 = sadd.s32 %s27, 1
      %s29 = scalar_select %p26, %s27, %s28
      %p32 = pneg %p26
      %p33 = scmp.eq.s32.totalorder %s17, 1
      %p34 = por %p32, %p33
      %p35 = scmp.ne.s32.totalorder %s27, %s30
      %p36 = scmp.eq.s32.totalorder %s17, 0
      %p37 = por %p35, %p36
      %p38 = scmp.ne.s32.totalorder %s27, %s30
      %p39 = scmp.eq.s32.totalorder %s22, 1
      %p40 = por %p38, %p39
      %p41 = scmp.ne.s32.totalorder %s30, %s31
      %p42 = scmp.eq.s32.totalorder %s22, 0
      %p43 = por %p41, %p42
      %p44 = scmp.ne.s32.totalorder %s30, %s31
      %p45 = scmp.eq.s32.totalorder %s23, 1
      %p46 = por %p44, %p45
      %p48 = scmp.ne.s32.totalorder %s31, %s47
      %p49 = scmp.eq.s32.totalorder %s23, 0
      %p50 = por %p48, %p49
      %s52 = sadd.s32 %s51, 1
      %p55 = scmp.eq.s32.totalorder %s17, 1
      %p56 = scmp.ne.s32.totalorder %s51, %s53
      %p57 = scmp.eq.s32.totalorder %s17, 0
      %p58 = por %p56, %p57
      %p59 = scmp.ne.s32.totalorder %s51, %s53
      %p60 = scmp.eq.s32.totalorder %s22, 1
      %p61 = por %p59, %p60
      %p62 = scmp.ne.s32.totalorder %s53, %s54
      %p63 = scmp.eq.s32.totalorder %s22, 0
      %p64 = por %p62, %p63
      %p65 = scmp.ne.s32.totalorder %s53, %s54
      %p66 = scmp.eq.s32.totalorder %s23, 1
      %p67 = por %p65, %p66
      %p69 = scmp.ne.s32.totalorder %s54, %s68
      %p70 = scmp.eq.s32.totalorder %s23, 0
      %p71 = por %p69, %p70
      %s73 = sadd.s32 %s72, 1
      %p76 = scmp.eq.s32.totalorder %s17, 1
      %p77 = scmp.ne.s32.totalorder %s72, %s74
      %p78 = scmp.eq.s32.totalorder %s17, 0
      %p79 = por %p77, %p78
      %p80 = scmp.ne.s32.totalorder %s72, %s74
      %p81 = scmp.eq.s32.totalorder %s22, 1
      %p82 = por %p80, %p81
      %p83 = scmp.ne.s32.totalorder %s74, %s75
      %p84 = scmp.eq.s32.totalorder %s22, 0
      %p85 = por %p83, %p84
      %p86 = scmp.ne.s32.totalorder %s74, %s75
      %p87 = scmp.eq.s32.totalorder %s23, 1
      %p88 = por %p86, %p87
      %p90 = scmp.ne.s32.totalorder %s75, %s89
      %p91 = scmp.eq.s32.totalorder %s23, 0
      %p92 = por %p90, %p91
      %s94 = sadd.s32 %s93, 1
      %p97 = scmp.eq.s32.totalorder %s17, 1
      %p98 = scmp.ne.s32.totalorder %s93, %s95
      %p99 = scmp.eq.s32.totalorder %s17, 0
      %p100 = por %p98, %p99
      %p101 = scmp.ne.s32.totalorder %s93, %s95
      %p102 = scmp.eq.s32.totalorder %s22, 1
      %p103 = por %p101, %p102
      %p104 = scmp.ne.s32.totalorder %s95, %s96
      %p105 = scmp.eq.s32.totalorder %s22, 0
      %p106 = por %p104, %p105
      %p107 = scmp.ne.s32.totalorder %s95, %s96
      %p108 = scmp.eq.s32.totalorder %s23, 1
      %p109 = por %p107, %p108
      %p111 = scmp.ne.s32.totalorder %s96, %s110
      %p112 = scmp.eq.s32.totalorder %s23, 0
      %p113 = por %p111, %p112
      %s114 = ssub.s32 %s17, %s24
      %p115 = scmp.eq.s32.totalorder %s114, 0
      %s117 = sadd.s32 %s116, 1
      %s118 = scalar_select %p115, %s116, %s117
      %p121 = pneg %p115
      %p122 = scmp.eq.s32.totalorder %s17, 1
      %p123 = por %p121, %p122
      %p124 = scmp.ne.s32.totalorder %s116, %s119
      %p125 = scmp.eq.s32.totalorder %s17, 0
      %p126 = por %p124, %p125
      %p127 = scmp.ne.s32.totalorder %s116, %s119
      %p128 = scmp.eq.s32.totalorder %s22, 1
      %p129 = por %p127, %p128
      %p130 = scmp.ne.s32.totalorder %s119, %s120
      %p131 = scmp.eq.s32.totalorder %s22, 0
      %p132 = por %p130, %p131
      %p133 = scmp.ne.s32.totalorder %s119, %s120
      %p134 = scmp.eq.s32.totalorder %s23, 1
      %p135 = por %p133, %p134
      %p137 = scmp.ne.s32.totalorder %s120, %s136
      %p138 = scmp.eq.s32.totalorder %s23, 0
      %p139 = por %p137, %p138
      %p140 = scmp.le.s32.totalorder 1, %s17
      %p141 = scmp.lt.s32.totalorder %s17, 3
      %p142 = pnand %p140, %p141
      %p143 = pneg %p142
      // Predicated region
      $region9: #{tpu_custom_call.1} parent=5 // pred_check
        _
      $region10: #{tpu_custom_call.1} parent=5 // pred_check_branch
        %145 = sbr.rel (%p142) target = $region12
      $region11: #{tpu_custom_call.1} parent=5 // pred_region
        %s146 = ssub.s32 %s17, 1
        // Predicated region
        $region13: #{tpu_custom_call.1} parent=11 // pred_check
          %p147 = pneg %p64
        $region14: #{tpu_custom_call.1} parent=11 // pred_check_branch
          %149 = sbr.rel (%p147) target = $region16
        $region15: #{tpu_custom_call.1} parent=11 // pred_region
          %s151 = ssub.s32 1024, 1024
          %152 = vsyncadd [#allocation6], %s151
          %s153 = sshll.u32 [#allocation5], 4
          %s154 = int_to_ptr.vmem [resolvable:$true] %s153
          %159 = dma.hbm_to_vmem [thread:$0]  %s1, 1024, %s154, [#allocation6], 128, 128, 8
        $region16: #{tpu_custom_call.1} parent=11 // pred_fallthru
          _
        // Predicated region
        $region17: #{tpu_custom_call.1} parent=11 // pred_check
          %p160 = pneg %p85
        $region18: #{tpu_custom_call.1} parent=11 // pred_check_branch
          %162 = sbr.rel (%p160) target = $region20
        $region19: #{tpu_custom_call.1} parent=11 // pred_region
          _
        $region20: #{tpu_custom_call.1} parent=11 // pred_fallthru
          _
        // Predicated region
        $region21: #{tpu_custom_call.1} parent=11 // pred_check
          %p163 = pneg %p106
        $region22: #{tpu_custom_call.1} parent=11 // pred_check_branch
          %165 = sbr.rel (%p163) target = $region24
        $region23: #{tpu_custom_call.1} parent=11 // pred_region
          _
        $region24: #{tpu_custom_call.1} parent=11 // pred_fallthru
          _
      $region12: #{tpu_custom_call.1} parent=5 // pred_fallthru
        _
      %p166 = scmp.lt.s32.totalorder %s17, 2
      // Predicated region
      $region25: #{tpu_custom_call.1} parent=5 // pred_check
        %p167 = pneg %p166
      $region26: #{tpu_custom_call.1} parent=5 // pred_check_branch
        %169 = sbr.rel (%p167) target = $region28
      $region27: #{tpu_custom_call.1} parent=5 // pred_region
        // Predicated region
        $region29: #{tpu_custom_call.1} parent=27 // pred_check
          %p170 = pneg %p37
        $region30: #{tpu_custom_call.1} parent=27 // pred_check_branch
          %172 = sbr.rel (%p170) target = $region32
        $region31: #{tpu_custom_call.1} parent=27 // pred_region
          %s173 = sand.u32 %s27, 1
          %s174 = scalar_lea.sflag [#allocation3], %s173
          %s175 = sand.u32 %s27, 1
          %s176 = smul.addr %s175, 64
          %s177 = scalar_lea.vmem [#allocation2], %s176
          %s179 = ssub.s32 1024, 1024
          %180 = vsyncadd %s174, %s179
          %s181 = smul.addr %s17, 8
          %s182 = smul.addr %s181, 128
          %s183 = scalar_lea.hbm %s0, %s182
          %s184 = sshll.u32 %s177, 4
          %s185 = int_to_ptr.vmem [resolvable:$true] %s184
          %190 = dma.hbm_to_vmem [thread:$0]  %s183, 1024, %s185, %s174, 128, 128, 8
        $region32: #{tpu_custom_call.1} parent=27 // pred_fallthru
          _
      $region28: #{tpu_custom_call.1} parent=5 // pred_fallthru
        _
      %p191 = scmp.le.s32.totalorder 1, %s17
      %p192 = scmp.lt.s32.totalorder %s17, 3
      %p193 = pnand %p191, %p192
      %p194 = pneg %p193
      // Predicated region
      $region33: #{tpu_custom_call.1} parent=5 // pred_check
        _
      $region34: #{tpu_custom_call.1} parent=5 // pred_check_branch
        %196 = sbr.rel (%p193) target = $region36
      $region35: #{tpu_custom_call.1} parent=5 // pred_region
        %s197 = ssub.s32 %s17, 1
        %s198 = sand.u32 %s30, 1
        %s199 = scalar_lea.sflag [#allocation3], %s198
        %s200 = sand.u32 %s30, 1
        %s201 = smul.addr %s200, 64
        %s202 = scalar_lea.vmem [#allocation2], %s201
        // Predicated region
        $region37: #{tpu_custom_call.1} parent=35 // pred_check
          %p203 = pneg %p43
        $region38: #{tpu_custom_call.1} parent=35 // pred_check_branch
          %205 = sbr.rel (%p203) target = $region40
        $region39: #{tpu_custom_call.1} parent=35 // pred_region
          %206 = dma.done %s199, 1024
        $region40: #{tpu_custom_call.1} parent=35 // pred_fallthru
          _
        // Predicated region
        $region41: #{tpu_custom_call.1} parent=35 // pred_check
          %p207 = pneg %p64
        $region42: #{tpu_custom_call.1} parent=35 // pred_check_branch
          %209 = sbr.rel (%p207) target = $region44
        $region43: #{tpu_custom_call.1} parent=35 // pred_region
          %210 = dma.done [#allocation6], 1024
        $region44: #{tpu_custom_call.1} parent=35 // pred_fallthru
          _
        %s211 = sand.u32 %s30, 1
        %s212 = scalar_lea.sflag [#allocation3], %s211
        %s213 = sand.u32 %s30, 1
        %s214 = smul.addr %s213, 64
        %s215 = scalar_lea.vmem [#allocation2], %s214
        %p216 = pneg %p43
        %p217 = pneg %p40
        %p218 = pneg %p64
        %p219 = pneg %p61
        %p220 = pneg %p85
        %p221 = pneg %p82
        %p222 = pneg %p106
        %p223 = pneg %p103
        %p224 = pneg %p132
        %p225 = pneg %p129
        %s226 = sand.u32 %s119, 1
        %s227 = scalar_lea.sflag [#allocation4], %s226
        %s228 = sand.u32 %s119, 1
        %s229 = smul.addr %s228, 2
        %s230 = scalar_lea.vmem [#allocation7], %s229
        %v232 = vld [vmem:[%s202] sm:$0xff]
        %v233 = vld [vmem:[%s202 + $0x8] sm:$0xff]
        %v234 = vld [vmem:[%s202 + $0x10] sm:$0xff]
        %v235 = vld [vmem:[%s202 + $0x18] sm:$0xff]
        %v236 = vld [vmem:[%s202 + $0x20] sm:$0xff]
        %v237 = vld [vmem:[%s202 + $0x28] sm:$0xff]
        %v238 = vld [vmem:[%s202 + $0x30] sm:$0xff]
        %v239 = vld [vmem:[%s202 + $0x38] sm:$0xff]
        %vm240 = vcmask 523264
        %v241 = vsel %vm240, %v232, 0.0
        %v242 = vsel %vm240, %v233, 0.0
        %v243 = vadd.f32 %v241, %v242
        %v244 = vsel %vm240, %v234, 0.0
        %v245 = vadd.f32 %v243, %v244
        %v246 = vsel %vm240, %v235, 0.0
        %v247 = vadd.f32 %v245, %v246
        %v248 = vsel %vm240, %v236, 0.0
        %v249 = vadd.f32 %v247, %v248
        %v250 = vsel %vm240, %v237, 0.0
        %v251 = vadd.f32 %v249, %v250
        %v252 = vsel %vm240, %v238, 0.0
        %v253 = vadd.f32 %v251, %v252
        %v254 = vsel %vm240, %v239, 0.0
        %v255 = vadd.f32 %v253, %v254
        %v256 = vrot.slane %v255, 4
        %v257 = vadd.f32 %v255, %v256
        %v258 = vrot.slane %v257, 2
        %v259 = vadd.f32 %v257, %v258
        %v260 = vrot.slane %v259, 1
        %v261 = vadd.f32 %v259, %v260
        %v262 = vrcp.pop 64.0
        %v263 = vmul.f32 %v261, %v262
        %v264 = vpack.c.bf16 %v263, %v263
        %v265 = vld [vmem:[#allocation5] sm:$0xff]
        %v266 = vld [vmem:[#allocation5 + $0x8] sm:$0xff]
        %v267 = vld [vmem:[#allocation5 + $0x10] sm:$0xff]
        %v268 = vld [vmem:[#allocation5 + $0x18] sm:$0xff]
        %v269 = vld [vmem:[#allocation5 + $0x20] sm:$0xff]
        %v270 = vld [vmem:[#allocation5 + $0x28] sm:$0xff]
        %v271 = vld [vmem:[#allocation5 + $0x30] sm:$0xff]
        %v272 = vld [vmem:[#allocation5 + $0x38] sm:$0xff]
        %v281 = vunpack.c.l.b16 %v265
        %v282 = vunpack.c.h.b16 %v265
        %v283 = vunpack.c.l.b16 %v266
        %v284 = vunpack.c.h.b16 %v266
        %v285 = vunpack.c.l.b16 %v267
        %v286 = vunpack.c.h.b16 %v267
        %v287 = vunpack.c.l.b16 %v268
        %v288 = vunpack.c.h.b16 %v268
        %v289 = vunpack.c.l.b16 %v269
        %v290 = vunpack.c.h.b16 %v269
        %v291 = vunpack.c.l.b16 %v270
        %v292 = vunpack.c.h.b16 %v270
        %v293 = vunpack.c.l.b16 %v271
        %v294 = vunpack.c.h.b16 %v271
        %v295 = vunpack.c.l.b16 %v272
        %v296 = vunpack.c.h.b16 %v272
        %v297 = vpack.c.b16 %v283, %v281
        %v298 = vpack.c.b16 %v284, %v282
        %v299 = vpack.c.b16 %v287, %v285
        %v300 = vpack.c.b16 %v288, %v286
        %v301 = vpack.c.b16 %v291, %v289
        %v302 = vpack.c.b16 %v292, %v290
        %v303 = vpack.c.b16 %v295, %v293
        %v304 = vpack.c.b16 %v296, %v294
        %v314 = vsel %vm240, %v264, 0
        %316 = vmatprep.subr.bf16.mxu0 0
        %317 = vmatpush1.bf16.msra.mxu0 0
        %318 = vmatprep.subr.bf16.mxu0 0
        %319 = vmatpush1.bf16.msra.mxu0 0
        %320 = vmatprep.subr.bf16.mxu0 0
        %321 = vmatpush1.bf16.msra.mxu0 0
        %322 = vmatprep.subr.bf16.mxu0 0
        %323 = vmatpush1.bf16.msra.mxu0 0
        %324 = vmatprep.subr.bf16.mxu0 %v304
        %325 = vmatpush1.bf16.msra.mxu0 %v303
        %326 = vmatprep.subr.bf16.mxu0 %v302
        %327 = vmatpush1.bf16.msra.mxu0 %v301
        %328 = vmatprep.subr.bf16.mxu0 %v300
        %329 = vmatpush1.bf16.msra.mxu0 %v299
        %330 = vmatprep.subr.bf16.mxu0 %v298
        %331 = vmatpush1.bf16.msra.mxu0 %v297
        %332 = vmatprep.subr.bf16.mxu0 0
        %333 = vmatpush2.bf16.msra.mxu0 0
        %334 = vmatprep.subr.bf16.mxu0 0
        %335 = vmatpush2.bf16.msra.mxu0 0
        %336 = vmatprep.subr.bf16.mxu0 0
        %337 = vmatpush2.bf16.msra.mxu0 0
        %338 = vmatprep.subr.bf16.mxu0 0
        %339 = vmatpush2.bf16.msra.mxu0 0
        %340 = vmatprep.subr.bf16.mxu0 0
        %341 = vmatpush2.bf16.msra.mxu0 0
        %342 = vmatprep.subr.bf16.mxu0 0
        %343 = vmatpush2.bf16.msra.mxu0 0
        %344 = vmatprep.subr.bf16.mxu0 0
        %345 = vmatpush2.bf16.msra.mxu0 0
        %346 = vmatprep.subr.bf16.mxu0 0
        %347 = vmatpush2.bf16.msra.mxu0 0
        %348 = vmatprep.mubr.bf16.mxu0 0
        %349 = vmatmul.mubr.bf16.gmra.mxu0 %v314
        %v350 = vpop.f32.mrf.mxu0
        %v351 = vadd.f32 0.0, %v350
        %v352 = vpop.f32.mrf.mxu0
        %v353 = vadd.f32 0.0, %v352
        %v354 = vpop.f32.mrf.mxu0
        %v355 = vpop.f32.mrf.mxu0
        %356 = vdwg.mxu0
        %v357 = vld [vmem:[%s2] sm:$0x3]
        %v359 = vlaneseq
        %v360 = vshrl.u32 %v359, 7
        %v361 = vsub.s32 0, %v360
        %v362 = vrot.slane %v357, %v361
        %v363 = vlaneseq
        %v364 = vshrl.u32 %v363, 7
        %v365 = vsub.s32 1, %v364
        %v366 = vrot.slane %v357, %v365
        %v369 = vmul.f32 %v351, %v362
        %v370 = vmul.f32 %v353, %v366
        %v371 = vld [vmem:[%s3] sm:$0x3]
        %v373 = vlaneseq
        %v374 = vshrl.u32 %v373, 7
        %v375 = vsub.s32 0, %v374
        %v376 = vrot.slane %v371, %v375
        %v377 = vlaneseq
        %v378 = vshrl.u32 %v377, 7
        %v379 = vsub.s32 1, %v378
        %v380 = vrot.slane %v371, %v379
        %v383 = vadd.f32 %v369, %v376
        %v384 = vadd.f32 %v370, %v380
        %v385 = vmax.f32 %v383, 0.0
        %v386 = vmax.f32 %v384, 0.0
        %v389 = vcombine.low %v385, %v386
        %v391 = vunpack.c.l.s4 1966171168
        %v392 = vunpack.c.0.s8 %v391
        %v393 = vlaneseq
        %v394 = vshrl.u32 %v393, 7
        %v395 = vsub.s32 %v392, %v394
        %v396 = vrot.slane %v389, %v395
        %v398 = vunpack.c.l.s4 1966171168
        %v399 = vunpack.c.0.s8 %v398
        %v400 = vlaneseq
        %v401 = vshrl.u32 %v400, 7
        %v402 = vsub.s32 %v399, %v401
        %v403 = vrot.slane %v396, %v402
        %v405 = vlaneseq
        %vm406 = vcmp.ge.s32.totalorder %v405, 0
        %vm407 = vcmp.lt.s32.totalorder %v405, 256
        %vm408 = vmand %vm406, %vm407
        %409 = vst.msk [vmem:[%s230] sm:$0x3] %vm408, %v403
        %s410 = sand.u32 %s119, 1
        %s411 = scalar_lea.sflag [#allocation4], %s410
        %s412 = sand.u32 %s119, 1
        %s413 = smul.addr %s412, 2
        %s414 = scalar_lea.vmem [#allocation7], %s413
        // Predicated region
        $region45: #{tpu_custom_call.1} parent=35 // pred_check
          %p415 = pneg %p129
        $region46: #{tpu_custom_call.1} parent=35 // pred_check_branch
          %417 = sbr.rel (%p415) target = $region48
        $region47: #{tpu_custom_call.1} parent=35 // pred_region
          %s419 = ssub.s32 32, 32
          %420 = vsyncadd %s411, %s419
          %s421 = smul.addr %s22, 2
          %s422 = smul.addr %s421, 16
          %s423 = scalar_lea.hbm %s4, %s422
          %s425 = sshll.u32 %s414, 4
          %s426 = int_to_ptr.vmem [resolvable:$true] %s425
          %428 = dma.vmem_to_hbm [thread:$0]  %s426, 32, %s423, %s411
        $region48: #{tpu_custom_call.1} parent=35 // pred_fallthru
          _
      $region36: #{tpu_custom_call.1} parent=5 // pred_fallthru
        _
      %p429 = scmp.le.s32.totalorder 2, %s17
      // Predicated region
      $region49: #{tpu_custom_call.1} parent=5 // pred_check
        %p430 = pneg %p429
      $region50: #{tpu_custom_call.1} parent=5 // pred_check_branch
        %432 = sbr.rel (%p430) target = $region52
      $region51: #{tpu_custom_call.1} parent=5 // pred_region
        %s433 = ssub.s32 %s17, 2
        // Predicated region
        $region53: #{tpu_custom_call.1} parent=51 // pred_check
          %p434 = pneg %p135
        $region54: #{tpu_custom_call.1} parent=51 // pred_check_branch
          %436 = sbr.rel (%p434) target = $region56
        $region55: #{tpu_custom_call.1} parent=51 // pred_region
          %s437 = sand.u32 %s120, 1
          %s438 = scalar_lea.sflag [#allocation4], %s437
          %s439 = sand.u32 %s120, 1
          %s440 = smul.addr %s439, 2
          %s441 = scalar_lea.vmem [#allocation7], %s440
          %442 = dma.done %s438, 32
        $region56: #{tpu_custom_call.1} parent=51 // pred_fallthru
          _
      $region52: #{tpu_custom_call.1} parent=5 // pred_fallthru
        _
    $region6: #{tpu_custom_call.1} parent=1 // loop_footer
      %s21 = sadd.s32 1, %s17
    $region7: #{tpu_custom_call.1} parent=1 // loop_footer_branch
      %16 = sbr.rel target = $region3
    $region8: #{tpu_custom_call.1} parent=1 // loop_exit
      _
    %443 = vsyncpa [#allocation3], 1
    %s444 = scalar_lea.sflag [#allocation3], 1
    %445 = vsyncpa %s444, 1
    %446 = vsyncpa [#allocation6], 1
    %447 = vsyncpa [#allocation4], 1
    %s448 = scalar_lea.sflag [#allocation4], 1
    %449 = vsyncpa %s448, 1

</llo_original>
